<compile_context>
chip_gen: v7x
topology: tpu7x:2x2x1
jax: 0.10.0
libtpu: 0.0.40
codegen_flags: <defaults>
</compile_context>

<pallas_src>
import jax
import jax.numpy as jnp
from jax.experimental import pallas as pl
from jax.experimental.pallas import tpu as pltpu


def attention_pool_kernel(x_ref, wf_ref, bf_ref, woT_ref, bo_ref, o_ref):
    TB, L, D = x_ref.shape

    # Keep the input dtype (bf16 by default) so the MXU runs narrow operands.
    x = x_ref[...].reshape(TB * L, D)                                  # (TB*L, D)

    # One fused matmul producing [ V | broadcast scores ], N = 2D.
    vs = jnp.dot(x, wf_ref[...], preferred_element_type=jnp.float32)   # (TB*L, 2D) f32
    vs = vs + bf_ref[...]
    v = vs[:, :D].reshape(TB, L, D)                                     # (TB, L, D) f32
    sb = vs[:, D:].reshape(TB, L, D)                                    # scores, replicated
                                                                        # over each head's lanes

    # Lane-dense softmax over the sequence axis (per batch row, per lane/head).
    m = jnp.max(sb, axis=1, keepdims=True)                              # (TB, 1, D)
    p = jnp.exp(sb - m)                                                 # (TB, L, D)
    denom = jnp.sum(p, axis=1)                                          # (TB, D)
    ctx = jnp.sum(p * v, axis=1)                                        # (TB, D)
    ctx = ctx * pl.reciprocal(denom, approx=True)                       # folded normalization

    # Output projection: the only remaining small matmul (M = TB rows).
    out = jnp.dot(ctx.astype(woT_ref.dtype), woT_ref[...],
                  preferred_element_type=jnp.float32) + bo_ref[...]
    o_ref[...] = out.astype(o_ref.dtype)


def _pick_batch_tile(B, L, D, x_itemsize, *, vmem_budget_bytes=12 << 20,
                     resident_weight_bytes=0):
    """VMEM-aware batch-tile pick.

    Per batch row we roughly hold: the double-buffered x block plus the f32
    [V | scores] tile, probabilities and a couple of elementwise temporaries.
    Keeps the (TB, D) output block sublane-aligned (TB % 8 == 0) and prefers
    >= 2 grid steps so v7x's two TensorCores both get work.
    """
    per_row = L * D * (2 * x_itemsize + 20)
    cap = max(8, (vmem_budget_bytes - resident_weight_bytes) // max(per_row, 1))
    cands = [tb for tb in range(8, B + 1, 8) if B % tb == 0 and tb <= cap]
    multi = [tb for tb in cands if tb <= B // 2]
    if multi:
        return max(multi)
    if cands:
        return max(cands)
    return B   # block dims == array dims is always legal (last resort)


def attention_pool(x, q, wq, wk, wv, bq, bk, bv, wo, bo, *, heads,
                   batch_tile=None, mxu_dtype=jnp.bfloat16,
                   vmem_budget_bytes=12 << 20, x_buffers=2):
    B, L, D = x.shape
    assert D % heads == 0, "heads must divide embed dim (same as nn.MultiheadAttention)"
    hd = D // heads
    scale = 1.0 / (hd ** 0.5)
    out_dtype = x.dtype
    f32 = jnp.float32

    # ---- one-time, batch-independent weight folding (all in f32) ----
    qp = (q.astype(f32) @ wq.astype(f32).T + bq.astype(f32)) * scale      # (1, D) scaled query-proj
    head_id = jnp.arange(D) // hd
    hsel = (head_id[:, None] == jnp.arange(heads)[None, :]).astype(f32)   # (D, heads)
    wks = (wk.astype(f32).T * qp) @ hsel                                  # (D, heads): K-proj folded
    bks = (bk.astype(f32) * qp) @ hsel                                    # (1, heads)
    wsb = wks @ hsel.T                                                    # (D, D): column-replicated
    bsb = bks @ hsel.T                                                    # (1, D)

    wf = jnp.concatenate([wv.astype(f32).T, wsb], axis=1).astype(mxu_dtype)  # (D, 2D) [Wv^T | Wsb]
    bfb = jnp.concatenate([bv.astype(f32), bsb], axis=1)                     # (1, 2D) f32 bias
    woT = wo.astype(f32).T.astype(mxu_dtype)                                 # (D, D)
    bof = bo.astype(f32)                                                     # (1, D)
    x_in = x.astype(mxu_dtype)

    itemsize = jnp.dtype(mxu_dtype).itemsize
    resident = wf.size * itemsize + woT.size * itemsize + (bfb.size + bof.size) * 4
    TB = batch_tile if batch_tile is not None else _pick_batch_tile(
        B, L, D, itemsize, vmem_budget_bytes=vmem_budget_bytes,
        resident_weight_bytes=resident)
    assert B % TB == 0, "batch tile must divide batch"

    x_spec_kwargs = {}
    if x_buffers != 2:
        # Optional deeper input pipelining (v6e/v7x, if the kernel turns HBM-bound).
        x_spec_kwargs["pipeline_mode"] = pl.Buffered(x_buffers)

    const2 = lambda i: (0, 0)   # weights/biases: same full block every step (DMA'd once)
    out = pl.pallas_call(
        attention_pool_kernel,
        out_shape=jax.ShapeDtypeStruct((B, D), out_dtype),
        grid=(B // TB,),
        in_specs=[
            pl.BlockSpec((TB, L, D), lambda i: (i, 0, 0), **x_spec_kwargs),  # x tile / step
            pl.BlockSpec((D, 2 * D), const2),                                # [Wv^T | Wsb]
            pl.BlockSpec((1, 2 * D), const2),                                # [bv   | bsb]
            pl.BlockSpec((D, D), const2),                                    # Wo^T
            pl.BlockSpec((1, D), const2),                                    # bo
        ],
        out_specs=pl.BlockSpec((TB, D), lambda i: (i, 0)),                   # lane-dense slab
        compiler_params=pltpu.CompilerParams(
            dimension_semantics=("parallel",),
            vmem_limit_bytes=32 << 20),
    )(x_in, wf, bfb, woT, bof)
    return out


def attention_pool_reference(x, q, wq, wk, wv, bq, bk, bv, wo, bo, *, heads):
    """Plain-JAX reference matching torch.nn.MultiheadAttention forward."""
    B, L, D = x.shape
    hd = D // heads
    scale = 1.0 / (hd ** 0.5)
    qb = jnp.broadcast_to(q, (B, 1, D))
    qp = qb @ wq.T + bq                                  # (B, 1, D)
    k = x @ wk.T + bk                                    # (B, L, D)
    v = x @ wv.T + bv                                    # (B, L, D)
    qh = qp.reshape(B, 1, heads, hd).transpose(0, 2, 1, 3)
    kh = k.reshape(B, L, heads, hd).transpose(0, 2, 1, 3)
    vh = v.reshape(B, L, heads, hd).transpose(0, 2, 1, 3)
    s = jnp.einsum("bhqd,bhkd->bhqk", qh, kh) * scale
    p = jax.nn.softmax(s, axis=-1)
    o = jnp.einsum("bhqk,bhkd->bhqd", p, vh)             # (B, H, 1, hd)
    o = o.transpose(0, 2, 1, 3).reshape(B, 1, D)
    return (o @ wo.T + bo)[:, 0, :]


if __name__ == "__main__":
    # Small shapes; D = 128 keeps compute/output tiles lane-dense; B = 16 gives
    # a 2-step grid (both v7x TensorCores get work with TB = 8).
    B, L, D, HEADS = 16, 16, 128, 8
    key = jax.random.PRNGKey(0)
    ks = jax.random.split(key, 10)

    x = jax.random.normal(ks[0], (B, L, D), dtype=jnp.float32)

    # Deterministic parameter init (shapes mirror the nn.Module's MHA parameters).
    q_param = jax.random.normal(ks[1], (1, D), dtype=jnp.float32)   # learned query
    wq = jax.random.normal(ks[2], (D, D), dtype=jnp.float32) * 0.1
    wk = jax.random.normal(ks[3], (D, D), dtype=jnp.float32) * 0.1
    wv = jax.random.normal(ks[4], (D, D), dtype=jnp.float32) * 0.1
    bq = jax.random.normal(ks[5], (1, D), dtype=jnp.float32) * 0.1
    bk = jax.random.normal(ks[6], (1, D), dtype=jnp.float32) * 0.1
    bv = jax.random.normal(ks[7], (1, D), dtype=jnp.float32) * 0.1
    wo = jax.random.normal(ks[8], (D, D), dtype=jnp.float32) * 0.1
    bo = jax.random.normal(ks[9], (1, D), dtype=jnp.float32) * 0.1

    args = (x, q_param, wq, wk, wv, bq, bk, bv, wo, bo)
    ref = attention_pool_reference(*args, heads=HEADS)

    # f32-MXU path: tight check of the restructured kernel math
    # (pl.reciprocal(approx=True) adds ~1e-3-level relative error).
    out_f32 = jax.block_until_ready(
        attention_pool(*args, heads=HEADS, mxu_dtype=jnp.float32))
    assert out_f32.shape == (B, D), out_f32.shape
    assert jnp.allclose(out_f32, ref, atol=2e-2, rtol=2e-2), "f32 path mismatch vs reference"

    # bf16-MXU path (default, per perf review): looser tolerance for bf16 rounding.
    out_bf16 = jax.block_until_ready(attention_pool(*args, heads=HEADS))
    assert out_bf16.shape == (B, D), out_bf16.shape
    assert jnp.allclose(out_bf16, ref, atol=8e-2, rtol=8e-2), "bf16 path mismatch vs reference"

    print("KERNEL_OK")
</pallas_src>

<mosaic_0001>
module attributes {stable_mosaic.version = 11 : i64} {
  func.func @attention_pool_kernel(%arg0: i32, %arg1: memref<8x16x128xf32, #tpu.memory_space<vmem>>, %arg2: memref<128x256xf32, #tpu.memory_space<vmem>>, %arg3: memref<1x256xf32, #tpu.memory_space<vmem>>, %arg4: memref<128x128xf32, #tpu.memory_space<vmem>>, %arg5: memref<1x128xf32, #tpu.memory_space<vmem>>, %arg6: memref<8x128xf32, #tpu.memory_space<vmem>>) attributes {dimension_semantics = [#tpu.dimension_semantics<parallel>], iteration_bounds = array<i64: 2>, scalar_prefetch = 0 : i64, scratch_operands = 0 : i64, tpu.core_type = #tpu.core_type<tc>, window_params = [{transform_indices = @transform_0, window_bounds = array<i64: 8, 16, 128>}, {pipeline_mode = #tpu.pipeline_mode<synchronous>, transform_indices = @transform_1, window_bounds = array<i64: 128, 256>}, {pipeline_mode = #tpu.pipeline_mode<synchronous>, transform_indices = @transform_2, window_bounds = array<i64: 1, 256>}, {pipeline_mode = #tpu.pipeline_mode<synchronous>, transform_indices = @transform_3, window_bounds = array<i64: 128, 128>}, {pipeline_mode = #tpu.pipeline_mode<synchronous>, transform_indices = @transform_4, window_bounds = array<i64: 1, 128>}, {transform_indices = @transform_5, window_bounds = array<i64: 8, 128>}]} {
    %c0 = arith.constant 0 : index
    %c0_0 = arith.constant 0 : index
    %c0_1 = arith.constant 0 : index
    %0 = vector.load %arg1[%c0, %c0_0, %c0_1] : memref<8x16x128xf32, #tpu.memory_space<vmem>>, vector<8x16x128xf32>
    %1 = vector.shape_cast %0 : vector<8x16x128xf32> to vector<128x128xf32>
    %c0_2 = arith.constant 0 : index
    %c0_3 = arith.constant 0 : index
    %2 = vector.load %arg2[%c0_2, %c0_3] : memref<128x256xf32, #tpu.memory_space<vmem>>, vector<128x256xf32>
    %cst = arith.constant dense<0.000000e+00> : vector<128x256xf32>
    %3 = tpu.matmul %1, %2, %cst {dimension_numbers = #tpu.dot_dimension_numbers<[1], [0], [0], [1], [0, 0, 1, 1], [], []>} : vector<128x128xf32>, vector<128x256xf32>, vector<128x256xf32> -> vector<128x256xf32>
    %c0_4 = arith.constant 0 : index
    %c0_5 = arith.constant 0 : index
    %4 = vector.load %arg3[%c0_4, %c0_5] : memref<1x256xf32, #tpu.memory_space<vmem>>, vector<1x256xf32>
    %5 = vector.broadcast %4 : vector<1x256xf32> to vector<128x256xf32>
    %6 = arith.addf %3, %5 : vector<128x256xf32>
    %7 = vector.extract_strided_slice %6 {offsets = [0, 0], sizes = [128, 128], strides = [1, 1]} : vector<128x256xf32> to vector<128x128xf32>
    %8 = vector.shape_cast %7 : vector<128x128xf32> to vector<8x16x128xf32>
    %9 = vector.extract_strided_slice %6 {offsets = [0, 128], sizes = [128, 128], strides = [1, 1]} : vector<128x256xf32> to vector<128x128xf32>
    %10 = vector.shape_cast %9 : vector<128x128xf32> to vector<8x16x128xf32>
    %cst_6 = arith.constant dense<0xFF800000> : vector<8x128xf32>
    %11 = vector.multi_reduction <maximumf>, %10, %cst_6 [1] : vector<8x16x128xf32> to vector<8x128xf32>
    %12 = vector.shape_cast %11 : vector<8x128xf32> to vector<8x1x128xf32>
    %13 = vector.broadcast %12 : vector<8x1x128xf32> to vector<8x16x128xf32>
    %14 = arith.subf %10, %13 : vector<8x16x128xf32>
    %15 = math.exp %14 : vector<8x16x128xf32>
    %cst_7 = arith.constant dense<0.000000e+00> : vector<8x128xf32>
    %16 = vector.multi_reduction <add>, %15, %cst_7 [1] : vector<8x16x128xf32> to vector<8x128xf32>
    %17 = arith.mulf %15, %8 : vector<8x16x128xf32>
    %cst_8 = arith.constant dense<0.000000e+00> : vector<8x128xf32>
    %18 = vector.multi_reduction <add>, %17, %cst_8 [1] : vector<8x16x128xf32> to vector<8x128xf32>
    %19 = tpu.reciprocal %16 {approx = true} : vector<8x128xf32> -> vector<8x128xf32>
    %20 = arith.mulf %18, %19 : vector<8x128xf32>
    %c0_9 = arith.constant 0 : index
    %c0_10 = arith.constant 0 : index
    %21 = vector.load %arg4[%c0_9, %c0_10] : memref<128x128xf32, #tpu.memory_space<vmem>>, vector<128x128xf32>
    %cst_11 = arith.constant dense<0.000000e+00> : vector<8x128xf32>
    %22 = tpu.matmul %20, %21, %cst_11 {dimension_numbers = #tpu.dot_dimension_numbers<[1], [0], [0], [1], [0, 0, 1, 1], [], []>} : vector<8x128xf32>, vector<128x128xf32>, vector<8x128xf32> -> vector<8x128xf32>
    %c0_12 = arith.constant 0 : index
    %c0_13 = arith.constant 0 : index
    %23 = vector.load %arg5[%c0_12, %c0_13] : memref<1x128xf32, #tpu.memory_space<vmem>>, vector<1x128xf32>
    %24 = vector.broadcast %23 : vector<1x128xf32> to vector<8x128xf32>
    %25 = arith.addf %22, %24 : vector<8x128xf32>
    %c0_14 = arith.constant 0 : index
    %c0_15 = arith.constant 0 : index
    %26 = vector.load %arg6[%c0_14, %c0_15] : memref<8x128xf32, #tpu.memory_space<vmem>>, vector<8x128xf32>
    tpu.vector_store %arg6[%c0_14, %c0_15], %25 {strides = array<i32>} : memref<8x128xf32, #tpu.memory_space<vmem>>, vector<8x128xf32>,
    return
  }
  func.func @transform_0(%arg0: i32) -> (i32, i32, i32) {
    %c0_i32 = arith.constant 0 : i32
    %c0_i32_0 = arith.constant 0 : i32
    %c0_i32_1 = arith.constant 0 : i32
    return %arg0, %c0_i32, %c0_i32_0 : i32, i32, i32
  }
  func.func @transform_1(%arg0: i32) -> (i32, i32) {
    %c0_i32 = arith.constant 0 : i32
    %c0_i32_0 = arith.constant 0 : i32
    %c0_i32_1 = arith.constant 0 : i32
    return %c0_i32, %c0_i32_0 : i32, i32
  }
  func.func @transform_2(%arg0: i32) -> (i32, i32) {
    %c0_i32 = arith.constant 0 : i32
    %c0_i32_0 = arith.constant 0 : i32
    %c0_i32_1 = arith.constant 0 : i32
    return %c0_i32, %c0_i32_0 : i32, i32
  }
  func.func @transform_3(%arg0: i32) -> (i32, i32) {
    %c0_i32 = arith.constant 0 : i32
    %c0_i32_0 = arith.constant 0 : i32
    %c0_i32_1 = arith.constant 0 : i32
    return %c0_i32, %c0_i32_0 : i32, i32
  }
  func.func @transform_4(%arg0: i32) -> (i32, i32) {
    %c0_i32 = arith.constant 0 : i32
    %c0_i32_0 = arith.constant 0 : i32
    %c0_i32_1 = arith.constant 0 : i32
    return %c0_i32, %c0_i32_0 : i32, i32
  }
  func.func @transform_5(%arg0: i32) -> (i32, i32) {
    %c0_i32 = arith.constant 0 : i32
    %c0_i32_0 = arith.constant 0 : i32
    return %arg0, %c0_i32 : i32, i32
  }
}

</mosaic_0001>

<llo_original>
// kernel: tpu_custom_call.1
$region0: #{tpu_custom_call.1}
  #allocation0 [shape = 'u32[]', space=smem, size = 0x4, offset = 0x4, fixed_abs, tag = 'smem constant byte address 0x4 - core index']
  #allocation1 [shape = 'u32[144,128]{1,0:T(1,128)}', space=vmem, size = 0x12000, scoped, tag = 'internal scratch']
  %s0 = inlined_call_operand.hbm [shape: f32[16,16,128], index: 0, kind: input, shape index: {}]
  %s1 = inlined_call_operand.hbm [shape: f32[128,256], index: 1, kind: input, shape index: {}]
  %s2 = inlined_call_operand.vmem [shape: f32[1,256], index: 2, kind: input, shape index: {}]
  %s3 = inlined_call_operand.hbm [shape: f32[128,128], index: 3, kind: input, shape index: {}]
  %s4 = inlined_call_operand.vmem [shape: f32[1,128], index: 4, kind: input, shape index: {}]
  %s5 = inlined_call_operand.hbm [shape: f32[16,128], index: 5, kind: output, shape index: {}]
  %s6 = sld [smem:[#allocation0]]
  $region65: #{tpu_custom_call.1} parent=0
    _
  %s8 = ssub.s32 1, %s6
  %s9 = scalar_select 0, %s8, %s6
  $region1: #{tpu_custom_call.1} parent=0
    #allocation2 [shape = 'u8[131072]{0}', space=vmem, size = 0x20000, scoped, tag = 'input window, operand 0']
    #allocation3 [shape = 's32[2]{0}', space=sflag, size = 0x8, scoped, tag = 'scoped memory for tpu_custom_call.1']
    #allocation4 [shape = 's32[2]{0}', space=sflag, size = 0x8, scoped, tag = 'scoped memory for tpu_custom_call.1']
    #allocation5 [shape = 'u8[131072]{0}', space=vmem, size = 0x20000, scoped, tag = 'input window, operand 1, single buffered']
    #allocation6 [shape = 's32[1]{0}', space=sflag, size = 0x4, scoped, tag = 'scoped memory for tpu_custom_call.1']
    #allocation7 [shape = 'u8[65536]{0}', space=vmem, size = 0x10000, scoped, tag = 'input window, operand 3, single buffered']
    #allocation8 [shape = 'u8[8192]{0}', space=vmem, size = 0x2000, scoped, tag = 'output window, operand 0']
    %10 = vsyncpa [#allocation3], 0
    %s11 = scalar_lea.sflag [#allocation3], 1
    %12 = vsyncpa %s11, 0
    %13 = vsyncpa [#allocation6], 0
    %14 = vsyncpa [#allocation4], 0
    %s15 = scalar_lea.sflag [#allocation4], 1
    %16 = vsyncpa %s15, 0
    loop: start=0, step=1, limit=4
    $region2: #{tpu_custom_call.1} parent=1 // loop_pre_header
      _
    $region3: #{tpu_custom_call.1} parent=1 // loop_header
      %s18 = sphi 0, %s22
      %p19 = scmp.ge.s32.totalorder %s18, 4
      %s28 = sphi 0, %s30
      %s31 = sphi 0, %s28
      %s32 = sphi 0, %s31
      %s48 = sphi 0, %s32
      %s52 = sphi 0, %s52
      %s54 = sphi 0, %s52
      %s55 = sphi 0, %s54
      %s69 = sphi 0, %s55
      %s73 = sphi 0, %s73
      %s75 = sphi 0, %s73
      %s76 = sphi 0, %s75
      %s90 = sphi 0, %s76
      %s94 = sphi 0, %s94
      %s96 = sphi 0, %s94
      %s97 = sphi 0, %s96
      %s111 = sphi 0, %s97
      %s115 = sphi 0, %s115
      %s117 = sphi 0, %s115
      %s118 = sphi 0, %s117
      %s132 = sphi 0, %s118
      %s138 = sphi 0, %s140
      %s141 = sphi 0, %s138
      %s142 = sphi 0, %s141
      %s158 = sphi 0, %s142
    $region4: #{tpu_custom_call.1} parent=1 // loop_header_branch
      %21 = sbr.rel (%p19) target = $region8
    $region5: #{tpu_custom_call.1} parent=1 // loop_body
      %s23 = ssub.s32 %s18, 1
      %s24 = ssub.s32 %s18, 2
      %s25 = sadd.s32 %s18, 1
      %s26 = ssub.s32 %s18, %s25
      %p27 = scmp.eq.s32.totalorder %s26, 0
      %s29 = sadd.s32 %s28, 1
      %s30 = scalar_select %p27, %s28, %s29
      %p33 = pneg %p27
      %p34 = scmp.eq.s32.totalorder %s18, 1
      %p35 = por %p33, %p34
      %p36 = scmp.ne.s32.totalorder %s28, %s31
      %p37 = scmp.eq.s32.totalorder %s18, 0
      %p38 = por %p36, %p37
      %p39 = scmp.ne.s32.totalorder %s28, %s31
      %p40 = scmp.eq.s32.totalorder %s23, 1
      %p41 = por %p39, %p40
      %p42 = scmp.ne.s32.totalorder %s31, %s32
      %p43 = scmp.eq.s32.totalorder %s23, 0
      %p44 = por %p42, %p43
      %p45 = scmp.ne.s32.totalorder %s31, %s32
      %p46 = scmp.eq.s32.totalorder %s24, 1
      %p47 = por %p45, %p46
      %p49 = scmp.ne.s32.totalorder %s32, %s48
      %p50 = scmp.eq.s32.totalorder %s24, 0
      %p51 = por %p49, %p50
      %s53 = sadd.s32 %s52, 1
      %p56 = scmp.eq.s32.totalorder %s18, 1
      %p57 = scmp.ne.s32.totalorder %s52, %s54
      %p58 = scmp.eq.s32.totalorder %s18, 0
      %p59 = por %p57, %p58
      %p60 = scmp.ne.s32.totalorder %s52, %s54
      %p61 = scmp.eq.s32.totalorder %s23, 1
      %p62 = por %p60, %p61
      %p63 = scmp.ne.s32.totalorder %s54, %s55
      %p64 = scmp.eq.s32.totalorder %s23, 0
      %p65 = por %p63, %p64
      %p66 = scmp.ne.s32.totalorder %s54, %s55
      %p67 = scmp.eq.s32.totalorder %s24, 1
      %p68 = por %p66, %p67
      %p70 = scmp.ne.s32.totalorder %s55, %s69
      %p71 = scmp.eq.s32.totalorder %s24, 0
      %p72 = por %p70, %p71
      %s74 = sadd.s32 %s73, 1
      %p77 = scmp.eq.s32.totalorder %s18, 1
      %p78 = scmp.ne.s32.totalorder %s73, %s75
      %p79 = scmp.eq.s32.totalorder %s18, 0
      %p80 = por %p78, %p79
      %p81 = scmp.ne.s32.totalorder %s73, %s75
      %p82 = scmp.eq.s32.totalorder %s23, 1
      %p83 = por %p81, %p82
      %p84 = scmp.ne.s32.totalorder %s75, %s76
      %p85 = scmp.eq.s32.totalorder %s23, 0
      %p86 = por %p84, %p85
      %p87 = scmp.ne.s32.totalorder %s75, %s76
      %p88 = scmp.eq.s32.totalorder %s24, 1
      %p89 = por %p87, %p88
      %p91 = scmp.ne.s32.totalorder %s76, %s90
      %p92 = scmp.eq.s32.totalorder %s24, 0
      %p93 = por %p91, %p92
      %s95 = sadd.s32 %s94, 1
      %p98 = scmp.eq.s32.totalorder %s18, 1
      %p99 = scmp.ne.s32.totalorder %s94, %s96
      %p100 = scmp.eq.s32.totalorder %s18, 0
      %p101 = por %p99, %p100
      %p102 = scmp.ne.s32.totalorder %s94, %s96
      %p103 = scmp.eq.s32.totalorder %s23, 1
      %p104 = por %p102, %p103
      %p105 = scmp.ne.s32.totalorder %s96, %s97
      %p106 = scmp.eq.s32.totalorder %s23, 0
      %p107 = por %p105, %p106
      %p108 = scmp.ne.s32.totalorder %s96, %s97
      %p109 = scmp.eq.s32.totalorder %s24, 1
      %p110 = por %p108, %p109
      %p112 = scmp.ne.s32.totalorder %s97, %s111
      %p113 = scmp.eq.s32.totalorder %s24, 0
      %p114 = por %p112, %p113
      %s116 = sadd.s32 %s115, 1
      %p119 = scmp.eq.s32.totalorder %s18, 1
      %p120 = scmp.ne.s32.totalorder %s115, %s117
      %p121 = scmp.eq.s32.totalorder %s18, 0
      %p122 = por %p120, %p121
      %p123 = scmp.ne.s32.totalorder %s115, %s117
      %p124 = scmp.eq.s32.totalorder %s23, 1
      %p125 = por %p123, %p124
      %p126 = scmp.ne.s32.totalorder %s117, %s118
      %p127 = scmp.eq.s32.totalorder %s23, 0
      %p128 = por %p126, %p127
      %p129 = scmp.ne.s32.totalorder %s117, %s118
      %p130 = scmp.eq.s32.totalorder %s24, 1
      %p131 = por %p129, %p130
      %p133 = scmp.ne.s32.totalorder %s118, %s132
      %p134 = scmp.eq.s32.totalorder %s24, 0
      %p135 = por %p133, %p134
      %s136 = ssub.s32 %s18, %s25
      %p137 = scmp.eq.s32.totalorder %s136, 0
      %s139 = sadd.s32 %s138, 1
      %s140 = scalar_select %p137, %s138, %s139
      %p143 = pneg %p137
      %p144 = scmp.eq.s32.totalorder %s18, 1
      %p145 = por %p143, %p144
      %p146 = scmp.ne.s32.totalorder %s138, %s141
      %p147 = scmp.eq.s32.totalorder %s18, 0
      %p148 = por %p146, %p147
      %p149 = scmp.ne.s32.totalorder %s138, %s141
      %p150 = scmp.eq.s32.totalorder %s23, 1
      %p151 = por %p149, %p150
      %p152 = scmp.ne.s32.totalorder %s141, %s142
      %p153 = scmp.eq.s32.totalorder %s23, 0
      %p154 = por %p152, %p153
      %p155 = scmp.ne.s32.totalorder %s141, %s142
      %p156 = scmp.eq.s32.totalorder %s24, 1
      %p157 = por %p155, %p156
      %p159 = scmp.ne.s32.totalorder %s142, %s158
      %p160 = scmp.eq.s32.totalorder %s24, 0
      %p161 = por %p159, %p160
      %p162 = scmp.le.s32.totalorder 1, %s18
      %p163 = scmp.lt.s32.totalorder %s18, 3
      %p164 = pnand %p162, %p163
      %p165 = pneg %p164
      // Predicated region
      $region9: #{tpu_custom_call.1} parent=5 // pred_check
        _
      $region10: #{tpu_custom_call.1} parent=5 // pred_check_branch
        %167 = sbr.rel (%p164) target = $region12
      $region11: #{tpu_custom_call.1} parent=5 // pred_region
        %s168 = ssub.s32 %s18, 1
        // Predicated region
        $region13: #{tpu_custom_call.1} parent=11 // pred_check
          %p169 = pneg %p65
        $region14: #{tpu_custom_call.1} parent=11 // pred_check_branch
          %171 = sbr.rel (%p169) target = $region16
        $region15: #{tpu_custom_call.1} parent=11 // pred_region
          %s173 = ssub.s32 4096, 4096
          %174 = vsyncadd [#allocation6], %s173
          %s175 = sshll.u32 [#allocation5], 4
          %s176 = int_to_ptr.vmem [resolvable:$true] %s175
          %181 = dma.hbm_to_vmem [thread:$0]  %s1, 4096, %s176, [#allocation6], 256, 256, 16
        $region16: #{tpu_custom_call.1} parent=11 // pred_fallthru
          _
        // Predicated region
        $region17: #{tpu_custom_call.1} parent=11 // pred_check
          %p182 = pneg %p86
        $region18: #{tpu_custom_call.1} parent=11 // pred_check_branch
          %184 = sbr.rel (%p182) target = $region20
        $region19: #{tpu_custom_call.1} parent=11 // pred_region
          _
        $region20: #{tpu_custom_call.1} parent=11 // pred_fallthru
          _
        // Predicated region
        $region21: #{tpu_custom_call.1} parent=11 // pred_check
          %p185 = pneg %p107
        $region22: #{tpu_custom_call.1} parent=11 // pred_check_branch
          %187 = sbr.rel (%p185) target = $region24
        $region23: #{tpu_custom_call.1} parent=11 // pred_region
          %s189 = ssub.s32 2048, 2048
          %190 = vsyncadd [#allocation6], %s189
          %s191 = sshll.u32 [#allocation7], 4
          %s192 = int_to_ptr.vmem [resolvable:$true] %s191
          %197 = dma.hbm_to_vmem [thread:$0]  %s3, 2048, %s192, [#allocation6], 128, 128, 8
        $region24: #{tpu_custom_call.1} parent=11 // pred_fallthru
          _
        // Predicated region
        $region25: #{tpu_custom_call.1} parent=11 // pred_check
          %p198 = pneg %p128
        $region26: #{tpu_custom_call.1} parent=11 // pred_check_branch
          %200 = sbr.rel (%p198) target = $region28
        $region27: #{tpu_custom_call.1} parent=11 // pred_region
          _
        $region28: #{tpu_custom_call.1} parent=11 // pred_fallthru
          _
      $region12: #{tpu_custom_call.1} parent=5 // pred_fallthru
        _
      %p201 = scmp.lt.s32.totalorder %s18, 2
      // Predicated region
      $region29: #{tpu_custom_call.1} parent=5 // pred_check
        %p202 = pneg %p201
      $region30: #{tpu_custom_call.1} parent=5 // pred_check_branch
        %204 = sbr.rel (%p202) target = $region32
      $region31: #{tpu_custom_call.1} parent=5 // pred_region
        // Predicated region
        $region33: #{tpu_custom_call.1} parent=31 // pred_check
          %p205 = pneg %p38
        $region34: #{tpu_custom_call.1} parent=31 // pred_check_branch
          %207 = sbr.rel (%p205) target = $region36
        $region35: #{tpu_custom_call.1} parent=31 // pred_region
          %s208 = sand.u32 %s28, 1
          %s209 = scalar_lea.sflag [#allocation3], %s208
          %s210 = sand.u32 %s28, 1
          %s211 = smul.addr %s210, 128
          %s212 = scalar_lea.vmem [#allocation2], %s211
          %s213 = smul.u32 8, %s18
          %s215 = ssub.s32 2048, 2048
          %216 = vsyncadd %s209, %s215
          %s217 = smul.addr %s213, 2
          %s218 = smul.addr %s217, 128
          %s219 = scalar_lea.hbm %s0, %s218
          %s220 = sshll.u32 %s212, 4
          %s221 = int_to_ptr.vmem [resolvable:$true] %s220
          %226 = dma.hbm_to_vmem [thread:$0]  %s219, 2048, %s221, %s209, 128, 128, 8
        $region36: #{tpu_custom_call.1} parent=31 // pred_fallthru
          _
      $region32: #{tpu_custom_call.1} parent=5 // pred_fallthru
        _
      %p227 = scmp.le.s32.totalorder 1, %s18
      %p228 = scmp.lt.s32.totalorder %s18, 3
      %p229 = pnand %p227, %p228
      %p230 = pneg %p229
      // Predicated region
      $region37: #{tpu_custom_call.1} parent=5 // pred_check
        _
      $region38: #{tpu_custom_call.1} parent=5 // pred_check_branch
        %232 = sbr.rel (%p229) target = $region40
      $region39: #{tpu_custom_call.1} parent=5 // pred_region
        %s233 = ssub.s32 %s18, 1
        %s234 = sand.u32 %s31, 1
        %s235 = scalar_lea.sflag [#allocation3], %s234
        %s236 = sand.u32 %s31, 1
        %s237 = smul.addr %s236, 128
        %s238 = scalar_lea.vmem [#allocation2], %s237
        // Predicated region
        $region41: #{tpu_custom_call.1} parent=39 // pred_check
          %p239 = pneg %p44
        $region42: #{tpu_custom_call.1} parent=39 // pred_check_branch
          %241 = sbr.rel (%p239) target = $region44
        $region43: #{tpu_custom_call.1} parent=39 // pred_region
          %242 = dma.done %s235, 2048
        $region44: #{tpu_custom_call.1} parent=39 // pred_fallthru
          _
        // Predicated region
        $region45: #{tpu_custom_call.1} parent=39 // pred_check
          %p243 = pneg %p65
        $region46: #{tpu_custom_call.1} parent=39 // pred_check_branch
          %245 = sbr.rel (%p243) target = $region48
        $region47: #{tpu_custom_call.1} parent=39 // pred_region
          %246 = dma.done [#allocation6], 4096
        $region48: #{tpu_custom_call.1} parent=39 // pred_fallthru
          _
        // Predicated region
        $region49: #{tpu_custom_call.1} parent=39 // pred_check
          %p247 = pneg %p107
        $region50: #{tpu_custom_call.1} parent=39 // pred_check_branch
          %249 = sbr.rel (%p247) target = $region52
        $region51: #{tpu_custom_call.1} parent=39 // pred_region
          %250 = dma.done [#allocation6], 2048
        $region52: #{tpu_custom_call.1} parent=39 // pred_fallthru
          _
        %s251 = sand.u32 %s31, 1
        %s252 = scalar_lea.sflag [#allocation3], %s251
        %s253 = sand.u32 %s31, 1
        %s254 = smul.addr %s253, 128
        %s255 = scalar_lea.vmem [#allocation2], %s254
        %p256 = pneg %p44
        %p257 = pneg %p41
        %p258 = pneg %p65
        %p259 = pneg %p62
        %p260 = pneg %p86
        %p261 = pneg %p83
        %p262 = pneg %p107
        %p263 = pneg %p104
        %p264 = pneg %p128
        %p265 = pneg %p125
        %p266 = pneg %p154
        %p267 = pneg %p151
        %s268 = sand.u32 %s141, 1
        %s269 = scalar_lea.sflag [#allocation4], %s268
        %s270 = sand.u32 %s141, 1
        %s271 = smul.addr %s270, 8
        %s272 = scalar_lea.vmem [#allocation8], %s271
        %s273 = smul.u32 8, %s23
        %v274 = vld [vmem:[%s238] sm:$0xff]
        %v275 = vld [vmem:[%s238 + $0x8] sm:$0xff]
        %v276 = vld [vmem:[%s238 + $0x10] sm:$0xff]
        %v277 = vld [vmem:[%s238 + $0x18] sm:$0xff]
        %v278 = vld [vmem:[%s238 + $0x20] sm:$0xff]
        %v279 = vld [vmem:[%s238 + $0x28] sm:$0xff]
        %v280 = vld [vmem:[%s238 + $0x30] sm:$0xff]
        %v281 = vld [vmem:[%s238 + $0x38] sm:$0xff]
        %v282 = vld [vmem:[%s238 + $0x40] sm:$0xff]
        %v283 = vld [vmem:[%s238 + $0x48] sm:$0xff]
        %v284 = vld [vmem:[%s238 + $0x50] sm:$0xff]
        %v285 = vld [vmem:[%s238 + $0x58] sm:$0xff]
        %v286 = vld [vmem:[%s238 + $0x60] sm:$0xff]
        %v287 = vld [vmem:[%s238 + $0x68] sm:$0xff]
        %v288 = vld [vmem:[%s238 + $0x70] sm:$0xff]
        %v289 = vld [vmem:[%s238 + $0x78] sm:$0xff]
        %v290 = vld [vmem:[#allocation5] sm:$0xff]
        %v291 = vld [vmem:[#allocation5 + $0x8] sm:$0xff]
        %v292 = vld [vmem:[#allocation5 + $0x10] sm:$0xff]
        %v293 = vld [vmem:[#allocation5 + $0x18] sm:$0xff]
        %v294 = vld [vmem:[#allocation5 + $0x20] sm:$0xff]
        %v295 = vld [vmem:[#allocation5 + $0x28] sm:$0xff]
        %v296 = vld [vmem:[#allocation5 + $0x30] sm:$0xff]
        %v297 = vld [vmem:[#allocation5 + $0x38] sm:$0xff]
        %v298 = vld [vmem:[#allocation5 + $0x40] sm:$0xff]
        %v299 = vld [vmem:[#allocation5 + $0x48] sm:$0xff]
        %v300 = vld [vmem:[#allocation5 + $0x50] sm:$0xff]
        %v301 = vld [vmem:[#allocation5 + $0x58] sm:$0xff]
        %v302 = vld [vmem:[#allocation5 + $0x60] sm:$0xff]
        %v303 = vld [vmem:[#allocation5 + $0x68] sm:$0xff]
        %v304 = vld [vmem:[#allocation5 + $0x70] sm:$0xff]
        %v305 = vld [vmem:[#allocation5 + $0x78] sm:$0xff]
        %v306 = vld [vmem:[#allocation5 + $0x80] sm:$0xff]
        %v307 = vld [vmem:[#allocation5 + $0x88] sm:$0xff]
        %v308 = vld [vmem:[#allocation5 + $0x90] sm:$0xff]
        %v309 = vld [vmem:[#allocation5 + $0x98] sm:$0xff]
        %v310 = vld [vmem:[#allocation5 + $0xa0] sm:$0xff]
        %v311 = vld [vmem:[#allocation5 + $0xa8] sm:$0xff]
        %v312 = vld [vmem:[#allocation5 + $0xb0] sm:$0xff]
        %v313 = vld [vmem:[#allocation5 + $0xb8] sm:$0xff]
        %v314 = vld [vmem:[#allocation5 + $0xc0] sm:$0xff]
        %v315 = vld [vmem:[#allocation5 + $0xc8] sm:$0xff]
        %v316 = vld [vmem:[#allocation5 + $0xd0] sm:$0xff]
        %v317 = vld [vmem:[#allocation5 + $0xd8] sm:$0xff]
        %v318 = vld [vmem:[#allocation5 + $0xe0] sm:$0xff]
        %v319 = vld [vmem:[#allocation5 + $0xe8] sm:$0xff]
        %v320 = vld [vmem:[#allocation5 + $0xf0] sm:$0xff]
        %v321 = vld [vmem:[#allocation5 + $0xf8] sm:$0xff]
        %v322 = vld [vmem:[%s2] sm:$0x3]
        %v324 = vlaneseq
        %v325 = vshrl.u32 %v324, 7
        %v326 = vsub.s32 0, %v325
        %v327 = vrot.slane %v322, %v326
        %v328 = vlaneseq
        %v329 = vshrl.u32 %v328, 7
        %v330 = vsub.s32 1, %v329
        %v331 = vrot.slane %v322, %v330
        %334 = vmatprep.subr.mxu0 %v291
        %335 = vmatpush1.msra.mxu0 %v290
        %336 = vmatprep.subr.mxu0 %v293
        %337 = vmatpush1.msra.mxu0 %v292
        %338 = vmatprep.subr.mxu0 %v295
        %339 = vmatpush1.msra.mxu0 %v294
        %340 = vmatprep.subr.mxu0 %v297
        %341 = vmatpush1.msra.mxu0 %v296
        %342 = vmatprep.subr.mxu0 %v299
        %343 = vmatpush1.msra.mxu0 %v298
        %344 = vmatprep.subr.mxu0 %v301
        %345 = vmatpush1.msra.mxu0 %v300
        %346 = vmatprep.subr.mxu0 %v303
        %347 = vmatpush1.msra.mxu0 %v302
        %348 = vmatprep.subr.mxu0 %v305
        %349 = vmatpush1.msra.mxu0 %v304
        %350 = vmatprep.subr.mxu0 %v307
        %351 = vmatpush1.msra.mxu0 %v306
        %352 = vmatprep.subr.mxu0 %v309
        %353 = vmatpush1.msra.mxu0 %v308
        %354 = vmatprep.subr.mxu0 %v311
        %355 = vmatpush1.msra.mxu0 %v310
        %356 = vmatprep.subr.mxu0 %v313
        %357 = vmatpush1.msra.mxu0 %v312
        %358 = vmatprep.subr.mxu0 %v315
        %359 = vmatpush1.msra.mxu0 %v314
        %360 = vmatprep.subr.mxu0 %v317
        %361 = vmatpush1.msra.mxu0 %v316
        %362 = vmatprep.subr.mxu0 %v319
        %363 = vmatpush1.msra.mxu0 %v318
        %364 = vmatprep.subr.mxu0 %v321
        %365 = vmatpush1.msra.mxu0 %v320
        %366 = vmatprep.subr.mxu0 0.0
        %367 = vmatpush1.msra.mxu0 0.0
        %368 = vmatprep.subr.mxu0 0.0
        %369 = vmatpush1.msra.mxu0 0.0
        %370 = vmatprep.subr.mxu0 0.0
        %371 = vmatpush1.msra.mxu0 0.0
        %372 = vmatprep.subr.mxu0 0.0
        %373 = vmatpush1.msra.mxu0 0.0
        %374 = vmatprep.subr.mxu0 0.0
        %375 = vmatpush1.msra.mxu0 0.0
        %376 = vmatprep.subr.mxu0 0.0
        %377 = vmatpush1.msra.mxu0 0.0
        %378 = vmatprep.subr.mxu0 0.0
        %379 = vmatpush1.msra.mxu0 0.0
        %380 = vmatprep.subr.mxu0 0.0
        %381 = vmatpush1.msra.mxu0 0.0
        %382 = vmatprep.subr.mxu0 0.0
        %383 = vmatpush1.msra.mxu0 0.0
        %384 = vmatprep.subr.mxu0 0.0
        %385 = vmatpush1.msra.mxu0 0.0
        %386 = vmatprep.subr.mxu0 0.0
        %387 = vmatpush1.msra.mxu0 0.0
        %388 = vmatprep.subr.mxu0 0.0
        %389 = vmatpush1.msra.mxu0 0.0
        %390 = vmatprep.subr.mxu0 0.0
        %391 = vmatpush1.msra.mxu0 0.0
        %392 = vmatprep.subr.mxu0 0.0
        %393 = vmatpush1.msra.mxu0 0.0
        %394 = vmatprep.subr.mxu0 0.0
        %395 = vmatpush1.msra.mxu0 0.0
        %396 = vmatprep.subr.mxu0 0.0
        %397 = vmatpush1.msra.mxu0 0.0
        %398 = vmatprep.mubr.f32.mxu0 0.0
        %399 = vmatmul.mubr.f32.gmra.mrb[0].mxu0 %v274
        %v400 = vpop.f32.mrb[0].mxu0
        %v401 = vadd.f32 %v327, %v400
        %v402 = vpop.f32.mrb[0].mxu0
        %v403 = vadd.f32 %v331, %v402
        %404 = vmatprep.mubr.f32.mxu0 0.0
        %405 = vmatmul.mubr.f32.gmra.mrb[0].mxu0 %v275
        %v406 = vpop.f32.mrb[0].mxu0
        %v407 = vadd.f32 %v327, %v406
        %v408 = vpop.f32.mrb[0].mxu0
        %v409 = vadd.f32 %v331, %v408
        %410 = vmatprep.mubr.f32.mxu0 0.0
        %411 = vmatmul.mubr.f32.gmra.mrb[0].mxu0 %v276
        %v412 = vpop.f32.mrb[0].mxu0
        %v413 = vadd.f32 %v327, %v412
        %v414 = vpop.f32.mrb[0].mxu0
        %v415 = vadd.f32 %v331, %v414
        %416 = vmatprep.mubr.f32.mxu0 0.0
        %417 = vmatmul.mubr.f32.gmra.mrb[0].mxu0 %v277
        %v418 = vpop.f32.mrb[0].mxu0
        %v419 = vadd.f32 %v327, %v418
        %v420 = vpop.f32.mrb[0].mxu0
        %v421 = vadd.f32 %v331, %v420
        %422 = vmatprep.mubr.f32.mxu0 0.0
        %423 = vmatmul.mubr.f32.gmra.mrb[0].mxu0 %v278
        %v424 = vpop.f32.mrb[0].mxu0
        %v425 = vadd.f32 %v327, %v424
        %v426 = vpop.f32.mrb[0].mxu0
        %v427 = vadd.f32 %v331, %v426
        %428 = vmatprep.mubr.f32.mxu0 0.0
        %429 = vmatmul.mubr.f32.gmra.mrb[0].mxu0 %v279
        %v430 = vpop.f32.mrb[0].mxu0
        %v431 = vadd.f32 %v327, %v430
        %v432 = vpop.f32.mrb[0].mxu0
        %v433 = vadd.f32 %v331, %v432
        %434 = vmatprep.mubr.f32.mxu0 0.0
        %435 = vmatmul.mubr.f32.gmra.mrb[0].mxu0 %v280
        %v436 = vpop.f32.mrb[0].mxu0
        %v437 = vadd.f32 %v327, %v436
        %v438 = vpop.f32.mrb[0].mxu0
        %v439 = vadd.f32 %v331, %v438
        %440 = vmatprep.mubr.f32.mxu0 0.0
        %441 = vmatmul.mubr.f32.gmra.mrb[0].mxu0 %v281
        %v442 = vpop.f32.mrb[0].mxu0
        %v443 = vadd.f32 %v327, %v442
        %v444 = vpop.f32.mrb[0].mxu0
        %v445 = vadd.f32 %v331, %v444
        %446 = vmatprep.mubr.f32.mxu0 0.0
        %447 = vmatmul.mubr.f32.gmra.mrb[0].mxu0 %v282
        %v448 = vpop.f32.mrb[0].mxu0
        %v449 = vadd.f32 %v327, %v448
        %v450 = vpop.f32.mrb[0].mxu0
        %v451 = vadd.f32 %v331, %v450
        %452 = vmatprep.mubr.f32.mxu0 0.0
        %453 = vmatmul.mubr.f32.gmra.mrb[0].mxu0 %v283
        %v454 = vpop.f32.mrb[0].mxu0
        %v455 = vadd.f32 %v327, %v454
        %v456 = vpop.f32.mrb[0].mxu0
        %v457 = vadd.f32 %v331, %v456
        %458 = vmatprep.mubr.f32.mxu0 0.0
        %459 = vmatmul.mubr.f32.gmra.mrb[0].mxu0 %v284
        %v460 = vpop.f32.mrb[0].mxu0
        %v461 = vadd.f32 %v327, %v460
        %v462 = vpop.f32.mrb[0].mxu0
        %v463 = vadd.f32 %v331, %v462
        %464 = vmatprep.mubr.f32.mxu0 0.0
        %465 = vmatmul.mubr.f32.gmra.mrb[0].mxu0 %v285
        %v466 = vpop.f32.mrb[0].mxu0
        %v467 = vadd.f32 %v327, %v466
        %v468 = vpop.f32.mrb[0].mxu0
        %v469 = vadd.f32 %v331, %v468
        %470 = vmatprep.mubr.f32.mxu0 0.0
        %471 = vmatmul.mubr.f32.gmra.mrb[0].mxu0 %v286
        %v472 = vpop.f32.mrb[0].mxu0
        %v473 = vadd.f32 %v327, %v472
        %v474 = vpop.f32.mrb[0].mxu0
        %v475 = vadd.f32 %v331, %v474
        %476 = vmatprep.mubr.f32.mxu0 0.0
        %477 = vmatmul.mubr.f32.gmra.mrb[0].mxu0 %v287
        %v478 = vpop.f32.mrb[0].mxu0
        %v479 = vadd.f32 %v327, %v478
        %v480 = vpop.f32.mrb[0].mxu0
        %v481 = vadd.f32 %v331, %v480
        %482 = vmatprep.mubr.f32.mxu0 0.0
        %483 = vmatmul.mubr.f32.gmra.mrb[0].mxu0 %v288
        %v484 = vpop.f32.mrb[0].mxu0
        %v485 = vadd.f32 %v327, %v484
        %v486 = vpop.f32.mrb[0].mxu0
        %v487 = vadd.f32 %v331, %v486
        %488 = vmatprep.mubr.f32.mxu0 0.0
        %489 = vmatmul.mubr.f32.gmra.mrb[0].mxu0 %v289
        %v490 = vpop.f32.mrb[0].mxu0
        %v491 = vadd.f32 %v327, %v490
        %v492 = vpop.f32.mrb[0].mxu0
        %v493 = vadd.f32 %v331, %v492
        %494 = vdwg.mxu0
        %v495 = vmax.f32 %v403, %v409
        %v496 = vrot.slane %v495, 4
        %v497 = vmax.f32 %v495, %v496
        %v498 = vrot.slane %v497, 2
        %v499 = vmax.f32 %v497, %v498
        %v500 = vrot.slane %v499, 1
        %v501 = vmax.f32 %v499, %v500
        %v502 = vmax.f32 %v415, %v421
        %v503 = vrot.slane %v502, 4
        %v504 = vmax.f32 %v502, %v503
        %v505 = vrot.slane %v504, 2
        %v506 = vmax.f32 %v504, %v505
        %v507 = vrot.slane %v506, 1
        %v508 = vmax.f32 %v506, %v507
        %v509 = vmax.f32 %v427, %v433
        %v510 = vrot.slane %v509, 4
        %v511 = vmax.f32 %v509, %v510
        %v512 = vrot.slane %v511, 2
        %v513 = vmax.f32 %v511, %v512
        %v514 = vrot.slane %v513, 1
        %v515 = vmax.f32 %v513, %v514
        %v516 = vmax.f32 %v439, %v445
        %v517 = vrot.slane %v516, 4
        %v518 = vmax.f32 %v516, %v517
        %v519 = vrot.slane %v518, 2
        %v520 = vmax.f32 %v518, %v519
        %v521 = vrot.slane %v520, 1
        %v522 = vmax.f32 %v520, %v521
        %v523 = vmax.f32 %v451, %v457
        %v524 = vrot.slane %v523, 4
        %v525 = vmax.f32 %v523, %v524
        %v526 = vrot.slane %v525, 2
        %v527 = vmax.f32 %v525, %v526
        %v528 = vrot.slane %v527, 1
        %v529 = vmax.f32 %v527, %v528
        %v530 = vmax.f32 %v463, %v469
        %v531 = vrot.slane %v530, 4
        %v532 = vmax.f32 %v530, %v531
        %v533 = vrot.slane %v532, 2
        %v534 = vmax.f32 %v532, %v533
        %v535 = vrot.slane %v534, 1
        %v536 = vmax.f32 %v534, %v535
        %v537 = vmax.f32 %v475, %v481
        %v538 = vrot.slane %v537, 4
        %v539 = vmax.f32 %v537, %v538
        %v540 = vrot.slane %v539, 2
        %v541 = vmax.f32 %v539, %v540
        %v542 = vrot.slane %v541, 1
        %v543 = vmax.f32 %v541, %v542
        %v544 = vmax.f32 %v487, %v493
        %v545 = vrot.slane %v544, 4
        %v546 = vmax.f32 %v544, %v545
        %v547 = vrot.slane %v546, 2
        %v548 = vmax.f32 %v546, %v547
        %v549 = vrot.slane %v548, 1
        %v550 = vmax.f32 %v548, %v549
        %v551 = vsub.f32 %v403, %v501
        %v552 = vsub.f32 %v409, %v501
        %v553 = vsub.f32 %v415, %v508
        %v554 = vsub.f32 %v421, %v508
        %v555 = vsub.f32 %v427, %v515
        %v556 = vsub.f32 %v433, %v515
        %v557 = vsub.f32 %v439, %v522
        %v558 = vsub.f32 %v445, %v522
        %v559 = vsub.f32 %v451, %v529
        %v560 = vsub.f32 %v457, %v529
        %v561 = vsub.f32 %v463, %v536
        %v562 = vsub.f32 %v469, %v536
        %v563 = vsub.f32 %v475, %v543
        %v564 = vsub.f32 %v481, %v543
        %v565 = vsub.f32 %v487, %v550
        %v566 = vsub.f32 %v493, %v550
        %v567 = vmul.f32 %v551, 1.442695
        %v568 = vpow.pop %v567
        %v569 = vmul.f32 %v552, 1.442695
        %v570 = vpow.pop %v569
        %v571 = vmul.f32 %v553, 1.442695
        %v572 = vpow.pop %v571
        %v573 = vmul.f32 %v554, 1.442695
        %v574 = vpow.pop %v573
        %v575 = vmul.f32 %v555, 1.442695
        %v576 = vpow.pop %v575
        %v577 = vmul.f32 %v556, 1.442695
        %v578 = vpow.pop %v577
        %v579 = vmul.f32 %v557, 1.442695
        %v580 = vpow.pop %v579
        %v581 = vmul.f32 %v558, 1.442695
        %v582 = vpow.pop %v581
        %v583 = vmul.f32 %v559, 1.442695
        %v584 = vpow.pop %v583
        %v585 = vmul.f32 %v560, 1.442695
        %v586 = vpow.pop %v585
        %v587 = vmul.f32 %v561, 1.442695
        %v588 = vpow.pop %v587
        %v589 = vmul.f32 %v562, 1.442695
        %v590 = vpow.pop %v589
        %v591 = vmul.f32 %v563, 1.442695
        %v592 = vpow.pop %v591
        %v593 = vmul.f32 %v564, 1.442695
        %v594 = vpow.pop %v593
        %v595 = vmul.f32 %v565, 1.442695
        %v596 = vpow.pop %v595
        %v597 = vmul.f32 %v566, 1.442695
        %v598 = vpow.pop %v597
        %v599 = vadd.f32 %v568, %v570
        %v600 = vrot.slane %v599, 4
        %v601 = vadd.f32 %v599, %v600
        %v602 = vrot.slane %v601, 2
        %v603 = vadd.f32 %v601, %v602
        %v604 = vrot.slane %v603, 1
        %v605 = vadd.f32 %v603, %v604
        %v606 = vadd.f32 %v572, %v574
        %v607 = vrot.slane %v606, 4
        %v608 = vadd.f32 %v606, %v607
        %v609 = vrot.slane %v608, 2
        %v610 = vadd.f32 %v608, %v609
        %v611 = vrot.slane %v610, 1
        %v612 = vadd.f32 %v610, %v611
        %v613 = vadd.f32 %v576, %v578
        %v614 = vrot.slane %v613, 4
        %v615 = vadd.f32 %v613, %v614
        %v616 = vrot.slane %v615, 2
        %v617 = vadd.f32 %v615, %v616
        %v618 = vrot.slane %v617, 1
        %v619 = vadd.f32 %v617, %v618
        %v620 = vadd.f32 %v580, %v582
        %v621 = vrot.slane %v620, 4
        %v622 = vadd.f32 %v620, %v621
        %v623 = vrot.slane %v622, 2
        %v624 = vadd.f32 %v622, %v623
        %v625 = vrot.slane %v624, 1
        %v626 = vadd.f32 %v624, %v625
        %v627 = vadd.f32 %v584, %v586
        %v628 = vrot.slane %v627, 4
        %v629 = vadd.f32 %v627, %v628
        %v630 = vrot.slane %v629, 2
        %v631 = vadd.f32 %v629, %v630
        %v632 = vrot.slane %v631, 1
        %v633 = vadd.f32 %v631, %v632
        %v634 = vadd.f32 %v588, %v590
        %v635 = vrot.slane %v634, 4
        %v636 = vadd.f32 %v634, %v635
        %v637 = vrot.slane %v636, 2
        %v638 = vadd.f32 %v636, %v637
        %v639 = vrot.slane %v638, 1
        %v640 = vadd.f32 %v638, %v639
        %v641 = vadd.f32 %v592, %v594
        %v642 = vrot.slane %v641, 4
        %v643 = vadd.f32 %v641, %v642
        %v644 = vrot.slane %v643, 2
        %v645 = vadd.f32 %v643, %v644
        %v646 = vrot.slane %v645, 1
        %v647 = vadd.f32 %v645, %v646
        %v648 = vadd.f32 %v596, %v598
        %v649 = vrot.slane %v648, 4
        %v650 = vadd.f32 %v648, %v649
        %v651 = vrot.slane %v650, 2
        %v652 = vadd.f32 %v650, %v651
        %v653 = vrot.slane %v652, 1
        %v654 = vadd.f32 %v652, %v653
        %v655 = vmul.f32 %v568, %v401
        %v656 = vmul.f32 %v570, %v407
        %v657 = vmul.f32 %v572, %v413
        %v658 = vmul.f32 %v574, %v419
        %v659 = vmul.f32 %v576, %v425
        %v660 = vmul.f32 %v578, %v431
        %v661 = vmul.f32 %v580, %v437
        %v662 = vmul.f32 %v582, %v443
        %v663 = vmul.f32 %v584, %v449
        %v664 = vmul.f32 %v586, %v455
        %v665 = vmul.f32 %v588, %v461
        %v666 = vmul.f32 %v590, %v467
        %v667 = vmul.f32 %v592, %v473
        %v668 = vmul.f32 %v594, %v479
        %v669 = vmul.f32 %v596, %v485
        %v670 = vmul.f32 %v598, %v491
        %v671 = vadd.f32 %v655, %v656
        %v672 = vrot.slane %v671, 4
        %v673 = vadd.f32 %v671, %v672
        %v674 = vrot.slane %v673, 2
        %v675 = vadd.f32 %v673, %v674
        %v676 = vrot.slane %v675, 1
        %v677 = vadd.f32 %v675, %v676
        %v678 = vadd.f32 %v657, %v658
        %v679 = vrot.slane %v678, 4
        %v680 = vadd.f32 %v678, %v679
        %v681 = vrot.slane %v680, 2
        %v682 = vadd.f32 %v680, %v681
        %v683 = vrot.slane %v682, 1
        %v684 = vadd.f32 %v682, %v683
        %v685 = vadd.f32 %v659, %v660
        %v686 = vrot.slane %v685, 4
        %v687 = vadd.f32 %v685, %v686
        %v688 = vrot.slane %v687, 2
        %v689 = vadd.f32 %v687, %v688
        %v690 = vrot.slane %v689, 1
        %v691 = vadd.f32 %v689, %v690
        %v692 = vadd.f32 %v661, %v662
        %v693 = vrot.slane %v692, 4
        %v694 = vadd.f32 %v692, %v693
        %v695 = vrot.slane %v694, 2
        %v696 = vadd.f32 %v694, %v695
        %v697 = vrot.slane %v696, 1
        %v698 = vadd.f32 %v696, %v697
        %v699 = vadd.f32 %v663, %v664
        %v700 = vrot.slane %v699, 4
        %v701 = vadd.f32 %v699, %v700
        %v702 = vrot.slane %v701, 2
        %v703 = vadd.f32 %v701, %v702
        %v704 = vrot.slane %v703, 1
        %v705 = vadd.f32 %v703, %v704
        %v706 = vadd.f32 %v665, %v666
        %v707 = vrot.slane %v706, 4
        %v708 = vadd.f32 %v706, %v707
        %v709 = vrot.slane %v708, 2
        %v710 = vadd.f32 %v708, %v709
        %v711 = vrot.slane %v710, 1
        %v712 = vadd.f32 %v710, %v711
        %v713 = vadd.f32 %v667, %v668
        %v714 = vrot.slane %v713, 4
        %v715 = vadd.f32 %v713, %v714
        %v716 = vrot.slane %v715, 2
        %v717 = vadd.f32 %v715, %v716
        %v718 = vrot.slane %v717, 1
        %v719 = vadd.f32 %v717, %v718
        %v720 = vadd.f32 %v669, %v670
        %v721 = vrot.slane %v720, 4
        %v722 = vadd.f32 %v720, %v721
        %v723 = vrot.slane %v722, 2
        %v724 = vadd.f32 %v722, %v723
        %v725 = vrot.slane %v724, 1
        %v726 = vadd.f32 %v724, %v725
        %v727 = vrcp.pop %v605
        %v728 = vrcp.pop %v612
        %v729 = vrcp.pop %v619
        %v730 = vrcp.pop %v626
        %v731 = vrcp.pop %v633
        %v732 = vrcp.pop %v640
        %v733 = vrcp.pop %v647
        %v734 = vrcp.pop %v654
        %v735 = vmul.f32 %v677, %v727
        %v736 = vmul.f32 %v684, %v728
        %v737 = vmul.f32 %v691, %v729
        %v738 = vmul.f32 %v698, %v730
        %v739 = vmul.f32 %v705, %v731
        %v740 = vmul.f32 %v712, %v732
        %v741 = vmul.f32 %v719, %v733
        %v742 = vmul.f32 %v726, %v734
        %v743 = vld [vmem:[#allocation7] sm:$0xff]
        %v744 = vld [vmem:[#allocation7 + $0x8] sm:$0xff]
        %v745 = vld [vmem:[#allocation7 + $0x10] sm:$0xff]
        %v746 = vld [vmem:[#allocation7 + $0x18] sm:$0xff]
        %v747 = vld [vmem:[#allocation7 + $0x20] sm:$0xff]
        %v748 = vld [vmem:[#allocation7 + $0x28] sm:$0xff]
        %v749 = vld [vmem:[#allocation7 + $0x30] sm:$0xff]
        %v750 = vld [vmem:[#allocation7 + $0x38] sm:$0xff]
        %v751 = vld [vmem:[#allocation7 + $0x40] sm:$0xff]
        %v752 = vld [vmem:[#allocation7 + $0x48] sm:$0xff]
        %v753 = vld [vmem:[#allocation7 + $0x50] sm:$0xff]
        %v754 = vld [vmem:[#allocation7 + $0x58] sm:$0xff]
        %v755 = vld [vmem:[#allocation7 + $0x60] sm:$0xff]
        %v756 = vld [vmem:[#allocation7 + $0x68] sm:$0xff]
        %v757 = vld [vmem:[#allocation7 + $0x70] sm:$0xff]
        %v758 = vld [vmem:[#allocation7 + $0x78] sm:$0xff]
        %v759 = vld [vmem:[%s4] sm:$0x1]
        %v761 = vlaneseq
        %v762 = vshrl.u32 %v761, 7
        %v763 = vsub.s32 0, %v762
        %v764 = vrot.slane %v759, %v763
        %vm774 = vcmask 1041409
        %v775 = vsel %vm774, %v736, %v735
        %vm776 = vcmask 1042434
        %v777 = vsel %vm776, %v737, %v775
        %vm778 = vcmask 1043459
        %v779 = vsel %vm778, %v738, %v777
        %vm780 = vcmask 1044484
        %v781 = vsel %vm780, %v739, %v779
        %vm782 = vcmask 1045509
        %v783 = vsel %vm782, %v740, %v781
        %vm784 = vcmask 1046534
        %v785 = vsel %vm784, %v741, %v783
        %vm786 = vcmask 1047559
        %v787 = vsel %vm786, %v742, %v785
        %789 = vmatprep.subr.mxu0 0.0
        %790 = vmatpush1.msra.mxu0 %v743
        %791 = vmatprep.subr.mxu0 0.0
        %792 = vmatpush1.msra.mxu0 %v744
        %793 = vmatprep.subr.mxu0 0.0
        %794 = vmatpush1.msra.mxu0 %v745
        %795 = vmatprep.subr.mxu0 0.0
        %796 = vmatpush1.msra.mxu0 %v746
        %797 = vmatprep.subr.mxu0 0.0
        %798 = vmatpush1.msra.mxu0 %v747
        %799 = vmatprep.subr.mxu0 0.0
        %800 = vmatpush1.msra.mxu0 %v748
        %801 = vmatprep.subr.mxu0 0.0
        %802 = vmatpush1.msra.mxu0 %v749
        %803 = vmatprep.subr.mxu0 0.0
        %804 = vmatpush1.msra.mxu0 %v750
        %805 = vmatprep.subr.mxu0 0.0
        %806 = vmatpush1.msra.mxu0 %v751
        %807 = vmatprep.subr.mxu0 0.0
        %808 = vmatpush1.msra.mxu0 %v752
        %809 = vmatprep.subr.mxu0 0.0
        %810 = vmatpush1.msra.mxu0 %v753
        %811 = vmatprep.subr.mxu0 0.0
        %812 = vmatpush1.msra.mxu0 %v754
        %813 = vmatprep.subr.mxu0 0.0
        %814 = vmatpush1.msra.mxu0 %v755
        %815 = vmatprep.subr.mxu0 0.0
        %816 = vmatpush1.msra.mxu0 %v756
        %817 = vmatprep.subr.mxu0 0.0
        %818 = vmatpush1.msra.mxu0 %v757
        %819 = vmatprep.subr.mxu0 0.0
        %820 = vmatpush1.msra.mxu0 %v758
        %821 = vmatprep.subr.mxu0 0.0
        %822 = vmatpush1.msra.mxu0 0.0
        %823 = vmatprep.subr.mxu0 0.0
        %824 = vmatpush1.msra.mxu0 0.0
        %825 = vmatprep.subr.mxu0 0.0
        %826 = vmatpush1.msra.mxu0 0.0
        %827 = vmatprep.subr.mxu0 0.0
        %828 = vmatpush1.msra.mxu0 0.0
        %829 = vmatprep.subr.mxu0 0.0
        %830 = vmatpush1.msra.mxu0 0.0
        %831 = vmatprep.subr.mxu0 0.0
        %832 = vmatpush1.msra.mxu0 0.0
        %833 = vmatprep.subr.mxu0 0.0
        %834 = vmatpush1.msra.mxu0 0.0
        %835 = vmatprep.subr.mxu0 0.0
        %836 = vmatpush1.msra.mxu0 0.0
        %837 = vmatprep.subr.mxu0 0.0
        %838 = vmatpush1.msra.mxu0 0.0
        %839 = vmatprep.subr.mxu0 0.0
        %840 = vmatpush1.msra.mxu0 0.0
        %841 = vmatprep.subr.mxu0 0.0
        %842 = vmatpush1.msra.mxu0 0.0
        %843 = vmatprep.subr.mxu0 0.0
        %844 = vmatpush1.msra.mxu0 0.0
        %845 = vmatprep.subr.mxu0 0.0
        %846 = vmatpush1.msra.mxu0 0.0
        %847 = vmatprep.subr.mxu0 0.0
        %848 = vmatpush1.msra.mxu0 0.0
        %849 = vmatprep.subr.mxu0 0.0
        %850 = vmatpush1.msra.mxu0 0.0
        %851 = vmatprep.subr.mxu0 0.0
        %852 = vmatpush1.msra.mxu0 0.0
        %853 = vmatprep.mubr.f32.mxu0 0.0
        %854 = vmatmul.mubr.f32.gmra.mrb[0].mxu0 %v787
        %v855 = vpop.f32.mrb[0].mxu0
        %v856 = vadd.f32 %v764, %v855
        %v857 = vpop.f32.mrb[0].mxu0
        %858 = vdwg.mxu0
        %859 = vst [vmem:[%s272] sm:$0xff] %v856
        %s860 = sand.u32 %s141, 1
        %s861 = scalar_lea.sflag [#allocation4], %s860
        %s862 = sand.u32 %s141, 1
        %s863 = smul.addr %s862, 8
        %s864 = scalar_lea.vmem [#allocation8], %s863
        // Predicated region
        $region53: #{tpu_custom_call.1} parent=39 // pred_check
          %p865 = pneg %p151
        $region54: #{tpu_custom_call.1} parent=39 // pred_check_branch
          %867 = sbr.rel (%p865) target = $region56
        $region55: #{tpu_custom_call.1} parent=39 // pred_region
          %s869 = ssub.s32 128, 128
          %870 = vsyncadd %s861, %s869
          %s871 = smul.addr %s23, 128
          %s872 = scalar_lea.hbm %s5, %s871
          %s874 = sshll.u32 %s864, 4
          %s875 = int_to_ptr.vmem [resolvable:$true] %s874
          %877 = dma.vmem_to_hbm [thread:$0]  %s875, 128, %s872, %s861
        $region56: #{tpu_custom_call.1} parent=39 // pred_fallthru
          _
      $region40: #{tpu_custom_call.1} parent=5 // pred_fallthru
        _
      %p878 = scmp.le.s32.totalorder 2, %s18
      // Predicated region
      $region57: #{tpu_custom_call.1} parent=5 // pred_check
        %p879 = pneg %p878
      $region58: #{tpu_custom_call.1} parent=5 // pred_check_branch
        %881 = sbr.rel (%p879) target = $region60
      $region59: #{tpu_custom_call.1} parent=5 // pred_region
        %s882 = ssub.s32 %s18, 2
        // Predicated region
        $region61: #{tpu_custom_call.1} parent=59 // pred_check
          %p883 = pneg %p157
        $region62: #{tpu_custom_call.1} parent=59 // pred_check_branch
          %885 = sbr.rel (%p883) target = $region64
        $region63: #{tpu_custom_call.1} parent=59 // pred_region
          %s886 = sand.u32 %s142, 1
          %s887 = scalar_lea.sflag [#allocation4], %s886
          %s888 = sand.u32 %s142, 1
          %s889 = smul.addr %s888, 8
          %s890 = scalar_lea.vmem [#allocation8], %s889
          %891 = dma.done %s887, 128
        $region64: #{tpu_custom_call.1} parent=59 // pred_fallthru
          _
      $region60: #{tpu_custom_call.1} parent=5 // pred_fallthru
        _
    $region6: #{tpu_custom_call.1} parent=1 // loop_footer
      %s22 = sadd.s32 1, %s18
    $region7: #{tpu_custom_call.1} parent=1 // loop_footer_branch
      %17 = sbr.rel target = $region3
    $region8: #{tpu_custom_call.1} parent=1 // loop_exit
      _
    %892 = vsyncpa [#allocation3], 1
    %s893 = scalar_lea.sflag [#allocation3], 1
    %894 = vsyncpa %s893, 1
    %895 = vsyncpa [#allocation6], 1
    %896 = vsyncpa [#allocation4], 1
    %s897 = scalar_lea.sflag [#allocation4], 1
    %898 = vsyncpa %s897, 1

</llo_original>
